<compile_context>
chip_gen: v7x
topology: tpu7x:2x2x1
jax: 0.10.0
libtpu: 0.0.40
codegen_flags: <defaults>
</compile_context>

<pallas_src>
import jax
import jax.numpy as jnp
from jax.experimental import pallas as pl
from jax.experimental.pallas import tpu as pltpu


def afm_kernel(emb_ref, w_lin_ref, b_lin_ref, p_ref, out_ref):
    emb = emb_ref[...]            # [F, D, TB]  (batch on the lane axis)
    w_lin = w_lin_ref[...]        # [F, D, 1]
    p = p_ref[...]                # [D, 1]

    # ---- LR part: y_linear[b] = sum_{f,d} emb[f,d,b] * w_lin[f,d]   (+ bias later)
    #      (width-1 matmul replaced by VPU mul + reduce)
    lin = jnp.sum(emb * w_lin, axis=(0, 1), keepdims=True)[0]       # [1, TB]

    # ---- FM part (reduce_sum=False): 0.5 * ((sum_f x)^2 - sum_f x^2) -> [D, TB]
    s1 = jnp.sum(emb, axis=0)            # [D, TB]
    s2 = jnp.sum(emb * emb, axis=0)      # [D, TB]
    y_fm = 0.5 * (s1 * s1 - s2)          # [D, TB]

    # ---- Attention: softmax over dim=1 of a [B, 1] tensor is identically 1.0, so
    #      atts * y_fm == y_fm exactly; the attention MLP (w_att, b_att, h, relu,
    #      exp, max, divide) is dead work and is elided (bit-identical output).

    # ---- Output projection: (atts * y_fm) @ p  ==  sum_d y_fm[d,b] * p[d]
    outs = jnp.sum(y_fm * p, axis=0, keepdims=True)                 # [1, TB]

    y = lin + outs + b_lin_ref[...]                                 # [1, TB]
    # sigmoid; reciprocal goes to the EUP slot (free) with approx=True
    out_ref[...] = pl.reciprocal(1.0 + jnp.exp(-y), approx=True)


def afm_forward(x_indices, params, *, tile_b=1024):
    """x_indices: int32 [B, F] sparse feature ids. Returns float32 [B]."""
    tables = params["emb_tables"]          # [F, V, D]
    B, F = x_indices.shape
    D = tables.shape[-1]

    # Embedding gather (plain-JAX glue), emitted directly in a B-on-lanes layout.
    # TODO(synk): for production batch sizes, fuse this gather into the kernel
    #             (scalar-prefetch x_indices into SMEM + manual DMA of table rows
    #             from HBM) to remove the HBM round-trip of the gathered embeddings.
    idx = jnp.broadcast_to(x_indices.T[:, :, None], (F, B, D))                 # [F, B, D]
    emb_t = jnp.swapaxes(jnp.take_along_axis(tables, idx, axis=1), 1, 2)       # [F, D, B]

    # LR weight reshaped to [F, D, 1]; torch's flatten(start_dim=1) is (f, d) ordered.
    w_lin_fd = params["w_lin"].reshape(F, D, 1)
    b_lin = params["b_lin"]                # [1, 1]
    p = params["p"]                        # [D, 1]

    # Batch tile: lane-dense multiple of 128 that divides B, else one full-batch block.
    if B % tile_b != 0 or tile_b % 128 != 0:
        tile_b = B
    grid = (B // tile_b,)

    out = pl.pallas_call(
        afm_kernel,
        out_shape=jax.ShapeDtypeStruct((1, B), jnp.float32),
        grid=grid,
        in_specs=[
            pl.BlockSpec((F, D, tile_b), lambda i: (0, 0, i)),   # emb tile (pipelined)
            pl.BlockSpec((F, D, 1), lambda i: (0, 0, 0)),        # w_lin   (resident)
            pl.BlockSpec((1, 1), lambda i: (0, 0)),              # b_lin   (resident)
            pl.BlockSpec((D, 1), lambda i: (0, 0)),              # p       (resident)
        ],
        out_specs=pl.BlockSpec((1, tile_b), lambda i: (0, i)),   # lane-dense output
        compiler_params=pltpu.CompilerParams(
            dimension_semantics=("parallel",),          # megacore on v7x
            vmem_limit_bytes=32 * 1024 * 1024),         # safe on 64 MiB v7x VMEM too
    )(emb_t, w_lin_fd, b_lin, p)
    return out[0]      # [B], matches torch.sigmoid(y.squeeze(1))


def xavier_uniform(key, shape):
    fan_in, fan_out = shape[0], shape[1]
    bound = jnp.sqrt(6.0 / (fan_in + fan_out))
    return jax.random.uniform(key, shape, jnp.float32, -bound, bound)


def init_params(key, num_fields, vocab_size, embed_dim, t):
    fm_dims = num_fields * embed_dim
    keys = jax.random.split(key, 7)
    return {
        "emb_tables": jax.random.normal(keys[0], (num_fields, vocab_size, embed_dim),
                                        jnp.float32) * 0.1,
        # LR: nn.Linear(fm_dims, 1)
        "w_lin": xavier_uniform(keys[1], (fm_dims, 1)),
        "b_lin": jnp.zeros((1, 1), jnp.float32),
        # attention parameters kept for module parity; mathematically they cannot
        # affect the output (softmax over a size-1 axis is identically 1.0).
        "w_att": xavier_uniform(keys[2], (embed_dim, t)),
        "b_att": jax.random.uniform(keys[3], (1, t), jnp.float32, -0.1, 0.1),
        "h": xavier_uniform(keys[4], (t, 1)),
        "p": xavier_uniform(keys[5], (embed_dim, 1)),
    }


if __name__ == "__main__":
    # batch, fields, vocab, embed_dim, attention hidden
    B, F, V, D, T = 256, 4, 32, 16, 8

    key = jax.random.PRNGKey(0)
    k_param, k_x = jax.random.split(key)
    params = init_params(k_param, F, V, D, T)
    x_indices = jax.random.randint(k_x, (B, F), 0, V, dtype=jnp.int32)

    # tile_b=128 exercises the batch grid (2 steps); production would use larger tiles.
    y = afm_forward(x_indices, params, tile_b=128)
    jax.block_until_ready(y)
    assert y.shape == (B,) and y.dtype == jnp.float32
    print("KERNEL_OK")
</pallas_src>

<mosaic_0001>
module attributes {stable_mosaic.version = 11 : i64} {
  func.func @afm_kernel(%arg0: i32, %arg1: memref<4x16x128xf32, #tpu.memory_space<vmem>>, %arg2: memref<4x16x1xf32, #tpu.memory_space<vmem>>, %arg3: memref<1x1xf32, #tpu.memory_space<vmem>>, %arg4: memref<16x1xf32, #tpu.memory_space<vmem>>, %arg5: memref<1x128xf32, #tpu.memory_space<vmem>>) attributes {dimension_semantics = [#tpu.dimension_semantics<parallel>], iteration_bounds = array<i64: 2>, scalar_prefetch = 0 : i64, scratch_operands = 0 : i64, tpu.core_type = #tpu.core_type<tc>, window_params = [{transform_indices = @transform_0, window_bounds = array<i64: 4, 16, 128>}, {pipeline_mode = #tpu.pipeline_mode<synchronous>, transform_indices = @transform_1, window_bounds = array<i64: 4, 16, 1>}, {pipeline_mode = #tpu.pipeline_mode<synchronous>, transform_indices = @transform_2, window_bounds = array<i64: 1, 1>}, {pipeline_mode = #tpu.pipeline_mode<synchronous>, transform_indices = @transform_3, window_bounds = array<i64: 16, 1>}, {transform_indices = @transform_4, window_bounds = array<i64: 1, 128>}]} {
    %c0 = arith.constant 0 : index
    %c0_0 = arith.constant 0 : index
    %c0_1 = arith.constant 0 : index
    %0 = vector.load %arg1[%c0, %c0_0, %c0_1] : memref<4x16x128xf32, #tpu.memory_space<vmem>>, vector<4x16x128xf32>
    %c0_2 = arith.constant 0 : index
    %c0_3 = arith.constant 0 : index
    %c0_4 = arith.constant 0 : index
    %1 = vector.load %arg2[%c0_2, %c0_3, %c0_4] : memref<4x16x1xf32, #tpu.memory_space<vmem>>, vector<4x16x1xf32>
    %c0_5 = arith.constant 0 : index
    %c0_6 = arith.constant 0 : index
    %2 = vector.load %arg4[%c0_5, %c0_6] : memref<16x1xf32, #tpu.memory_space<vmem>>, vector<16x1xf32>
    %3 = vector.broadcast %1 : vector<4x16x1xf32> to vector<4x16x128xf32>
    %4 = arith.mulf %0, %3 : vector<4x16x128xf32>
    %cst = arith.constant dense<0.000000e+00> : vector<128xf32>
    %5 = vector.multi_reduction <add>, %4, %cst [0, 1] : vector<4x16x128xf32> to vector<128xf32>
    %6 = vector.shape_cast %5 : vector<128xf32> to vector<1x1x128xf32>
    %7 = vector.shape_cast %6 : vector<1x1x128xf32> to vector<1x128xf32>
    %cst_7 = arith.constant dense<0.000000e+00> : vector<16x128xf32>
    %8 = vector.multi_reduction <add>, %0, %cst_7 [0] : vector<4x16x128xf32> to vector<16x128xf32>
    %9 = arith.mulf %0, %0 : vector<4x16x128xf32>
    %cst_8 = arith.constant dense<0.000000e+00> : vector<16x128xf32>
    %10 = vector.multi_reduction <add>, %9, %cst_8 [0] : vector<4x16x128xf32> to vector<16x128xf32>
    %11 = arith.mulf %8, %8 : vector<16x128xf32>
    %12 = arith.subf %11, %10 : vector<16x128xf32>
    %cst_9 = arith.constant 5.000000e-01 : f32
    %13 = vector.broadcast %cst_9 : f32 to vector<16x128xf32>
    %14 = arith.mulf %13, %12 : vector<16x128xf32>
    %15 = vector.broadcast %2 : vector<16x1xf32> to vector<16x128xf32>
    %16 = arith.mulf %14, %15 : vector<16x128xf32>
    %cst_10 = arith.constant dense<0.000000e+00> : vector<128xf32>
    %17 = vector.multi_reduction <add>, %16, %cst_10 [0] : vector<16x128xf32> to vector<128xf32>
    %18 = vector.shape_cast %17 : vector<128xf32> to vector<1x128xf32>
    %19 = arith.addf %7, %18 : vector<1x128xf32>
    %c0_11 = arith.constant 0 : index
    %c0_12 = arith.constant 0 : index
    %20 = vector.load %arg3[%c0_11, %c0_12] : memref<1x1xf32, #tpu.memory_space<vmem>>, vector<1x1xf32>
    %21 = vector.broadcast %20 : vector<1x1xf32> to vector<1x128xf32>
    %22 = arith.addf %19, %21 : vector<1x128xf32>
    %cst_13 = arith.constant 0.000000e+00 : f32
    %23 = vector.broadcast %cst_13 : f32 to vector<1x128xf32>
    %24 = arith.subf %23, %22 : vector<1x128xf32>
    %25 = math.exp %24 : vector<1x128xf32>
    %cst_14 = arith.constant 1.000000e+00 : f32
    %26 = vector.broadcast %cst_14 : f32 to vector<1x128xf32>
    %27 = arith.addf %26, %25 : vector<1x128xf32>
    %28 = tpu.reciprocal %27 {approx = true} : vector<1x128xf32> -> vector<1x128xf32>
    %c0_15 = arith.constant 0 : index
    %c0_16 = arith.constant 0 : index
    %29 = vector.load %arg5[%c0_15, %c0_16] : memref<1x128xf32, #tpu.memory_space<vmem>>, vector<1x128xf32>
    tpu.vector_store %arg5[%c0_15, %c0_16], %28 {strides = array<i32>} : memref<1x128xf32, #tpu.memory_space<vmem>>, vector<1x128xf32>,
    return
  }
  func.func @transform_0(%arg0: i32) -> (i32, i32, i32) {
    %c0_i32 = arith.constant 0 : i32
    %c0_i32_0 = arith.constant 0 : i32
    %c0_i32_1 = arith.constant 0 : i32
    return %c0_i32, %c0_i32_0, %arg0 : i32, i32, i32
  }
  func.func @transform_1(%arg0: i32) -> (i32, i32, i32) {
    %c0_i32 = arith.constant 0 : i32
    %c0_i32_0 = arith.constant 0 : i32
    %c0_i32_1 = arith.constant 0 : i32
    %c0_i32_2 = arith.constant 0 : i32
    return %c0_i32, %c0_i32_0, %c0_i32_1 : i32, i32, i32
  }
  func.func @transform_2(%arg0: i32) -> (i32, i32) {
    %c0_i32 = arith.constant 0 : i32
    %c0_i32_0 = arith.constant 0 : i32
    %c0_i32_1 = arith.constant 0 : i32
    return %c0_i32, %c0_i32_0 : i32, i32
  }
  func.func @transform_3(%arg0: i32) -> (i32, i32) {
    %c0_i32 = arith.constant 0 : i32
    %c0_i32_0 = arith.constant 0 : i32
    %c0_i32_1 = arith.constant 0 : i32
    return %c0_i32, %c0_i32_0 : i32, i32
  }
  func.func @transform_4(%arg0: i32) -> (i32, i32) {
    %c0_i32 = arith.constant 0 : i32
    %c0_i32_0 = arith.constant 0 : i32
    return %c0_i32, %arg0 : i32, i32
  }
}

</mosaic_0001>

<llo_original>
// kernel: tpu_custom_call.1
$region0: #{tpu_custom_call.1}
  #allocation0 [shape = 'u32[]', space=smem, size = 0x4, offset = 0x4, fixed_abs, tag = 'smem constant byte address 0x4 - core index']
  #allocation1 [shape = 'u32[144,128]{1,0:T(1,128)}', space=vmem, size = 0x12000, scoped, tag = 'internal scratch']
  #allocation2 [shape = 'f32[1,1]{1,0:T(1,128)S(1)}', space=vmem, size = 0x200, scoped, tag = 'scoped memory for tpu_custom_call.1']
  %s0 = inlined_call_operand.hbm [shape: f32[4,16,256], index: 0, kind: input, shape index: {}]
  %s1 = inlined_call_operand.vmem [shape: f32[4,16,1], index: 1, kind: input, shape index: {}]
  %s2 = inlined_call_operand.<no memory space> [shape: f32[1,1], index: 2, kind: input, shape index: {}]
  %s3 = inlined_call_operand.vmem [shape: f32[16,1], index: 3, kind: input, shape index: {}]
  %s4 = inlined_call_operand.hbm [shape: f32[1,256], index: 4, kind: output, shape index: {}]
  %s5 = sld [smem:[#allocation0]]
  $region53: #{tpu_custom_call.1} parent=0
    _
  %s7 = ssub.s32 1, %s5
  %s8 = scalar_select 0, %s7, %s5
  %v9 = vstv %s2
  %10 = vst [vmem:[#allocation2] sm:$0x1] %v9
  $region1: #{tpu_custom_call.1} parent=0
    #allocation3 [shape = 'u8[65536]{0}', space=vmem, size = 0x10000, scoped, tag = 'input window, operand 0']
    #allocation4 [shape = 's32[2]{0}', space=sflag, size = 0x8, scoped, tag = 'scoped memory for tpu_custom_call.1']
    #allocation5 [shape = 's32[2]{0}', space=sflag, size = 0x8, scoped, tag = 'scoped memory for tpu_custom_call.1']
    #allocation6 [shape = 'u8[1024]{0}', space=vmem, size = 0x400, scoped, tag = 'output window, operand 0']
    %11 = vsyncpa [#allocation4], 0
    %s12 = scalar_lea.sflag [#allocation4], 1
    %13 = vsyncpa %s12, 0
    %14 = vsyncpa [#allocation5], 0
    %s15 = scalar_lea.sflag [#allocation5], 1
    %16 = vsyncpa %s15, 0
    loop: start=0, step=1, limit=4
    $region2: #{tpu_custom_call.1} parent=1 // loop_pre_header
      _
    $region3: #{tpu_custom_call.1} parent=1 // loop_header
      %s18 = sphi 0, %s22
      %p19 = scmp.ge.s32.totalorder %s18, 4
      %s28 = sphi 0, %s30
      %s31 = sphi 0, %s28
      %s32 = sphi 0, %s31
      %s48 = sphi 0, %s32
      %s52 = sphi 0, %s52
      %s54 = sphi 0, %s52
      %s55 = sphi 0, %s54
      %s69 = sphi 0, %s55
      %s73 = sphi 0, %s73
      %s75 = sphi 0, %s73
      %s76 = sphi 0, %s75
      %s90 = sphi 0, %s76
      %s94 = sphi 0, %s94
      %s96 = sphi 0, %s94
      %s97 = sphi 0, %s96
      %s111 = sphi 0, %s97
      %s117 = sphi 0, %s119
      %s120 = sphi 0, %s117
      %s121 = sphi 0, %s120
      %s137 = sphi 0, %s121
    $region4: #{tpu_custom_call.1} parent=1 // loop_header_branch
      %21 = sbr.rel (%p19) target = $region8
    $region5: #{tpu_custom_call.1} parent=1 // loop_body
      %s23 = ssub.s32 %s18, 1
      %s24 = ssub.s32 %s18, 2
      %s25 = sadd.s32 %s18, 1
      %s26 = ssub.s32 %s18, %s25
      %p27 = scmp.eq.s32.totalorder %s26, 0
      %s29 = sadd.s32 %s28, 1
      %s30 = scalar_select %p27, %s28, %s29
      %p33 = pneg %p27
      %p34 = scmp.eq.s32.totalorder %s18, 1
      %p35 = por %p33, %p34
      %p36 = scmp.ne.s32.totalorder %s28, %s31
      %p37 = scmp.eq.s32.totalorder %s18, 0
      %p38 = por %p36, %p37
      %p39 = scmp.ne.s32.totalorder %s28, %s31
      %p40 = scmp.eq.s32.totalorder %s23, 1
      %p41 = por %p39, %p40
      %p42 = scmp.ne.s32.totalorder %s31, %s32
      %p43 = scmp.eq.s32.totalorder %s23, 0
      %p44 = por %p42, %p43
      %p45 = scmp.ne.s32.totalorder %s31, %s32
      %p46 = scmp.eq.s32.totalorder %s24, 1
      %p47 = por %p45, %p46
      %p49 = scmp.ne.s32.totalorder %s32, %s48
      %p50 = scmp.eq.s32.totalorder %s24, 0
      %p51 = por %p49, %p50
      %s53 = sadd.s32 %s52, 1
      %p56 = scmp.eq.s32.totalorder %s18, 1
      %p57 = scmp.ne.s32.totalorder %s52, %s54
      %p58 = scmp.eq.s32.totalorder %s18, 0
      %p59 = por %p57, %p58
      %p60 = scmp.ne.s32.totalorder %s52, %s54
      %p61 = scmp.eq.s32.totalorder %s23, 1
      %p62 = por %p60, %p61
      %p63 = scmp.ne.s32.totalorder %s54, %s55
      %p64 = scmp.eq.s32.totalorder %s23, 0
      %p65 = por %p63, %p64
      %p66 = scmp.ne.s32.totalorder %s54, %s55
      %p67 = scmp.eq.s32.totalorder %s24, 1
      %p68 = por %p66, %p67
      %p70 = scmp.ne.s32.totalorder %s55, %s69
      %p71 = scmp.eq.s32.totalorder %s24, 0
      %p72 = por %p70, %p71
      %s74 = sadd.s32 %s73, 1
      %p77 = scmp.eq.s32.totalorder %s18, 1
      %p78 = scmp.ne.s32.totalorder %s73, %s75
      %p79 = scmp.eq.s32.totalorder %s18, 0
      %p80 = por %p78, %p79
      %p81 = scmp.ne.s32.totalorder %s73, %s75
      %p82 = scmp.eq.s32.totalorder %s23, 1
      %p83 = por %p81, %p82
      %p84 = scmp.ne.s32.totalorder %s75, %s76
      %p85 = scmp.eq.s32.totalorder %s23, 0
      %p86 = por %p84, %p85
      %p87 = scmp.ne.s32.totalorder %s75, %s76
      %p88 = scmp.eq.s32.totalorder %s24, 1
      %p89 = por %p87, %p88
      %p91 = scmp.ne.s32.totalorder %s76, %s90
      %p92 = scmp.eq.s32.totalorder %s24, 0
      %p93 = por %p91, %p92
      %s95 = sadd.s32 %s94, 1
      %p98 = scmp.eq.s32.totalorder %s18, 1
      %p99 = scmp.ne.s32.totalorder %s94, %s96
      %p100 = scmp.eq.s32.totalorder %s18, 0
      %p101 = por %p99, %p100
      %p102 = scmp.ne.s32.totalorder %s94, %s96
      %p103 = scmp.eq.s32.totalorder %s23, 1
      %p104 = por %p102, %p103
      %p105 = scmp.ne.s32.totalorder %s96, %s97
      %p106 = scmp.eq.s32.totalorder %s23, 0
      %p107 = por %p105, %p106
      %p108 = scmp.ne.s32.totalorder %s96, %s97
      %p109 = scmp.eq.s32.totalorder %s24, 1
      %p110 = por %p108, %p109
      %p112 = scmp.ne.s32.totalorder %s97, %s111
      %p113 = scmp.eq.s32.totalorder %s24, 0
      %p114 = por %p112, %p113
      %s115 = ssub.s32 %s18, %s25
      %p116 = scmp.eq.s32.totalorder %s115, 0
      %s118 = sadd.s32 %s117, 1
      %s119 = scalar_select %p116, %s117, %s118
      %p122 = pneg %p116
      %p123 = scmp.eq.s32.totalorder %s18, 1
      %p124 = por %p122, %p123
      %p125 = scmp.ne.s32.totalorder %s117, %s120
      %p126 = scmp.eq.s32.totalorder %s18, 0
      %p127 = por %p125, %p126
      %p128 = scmp.ne.s32.totalorder %s117, %s120
      %p129 = scmp.eq.s32.totalorder %s23, 1
      %p130 = por %p128, %p129
      %p131 = scmp.ne.s32.totalorder %s120, %s121
      %p132 = scmp.eq.s32.totalorder %s23, 0
      %p133 = por %p131, %p132
      %p134 = scmp.ne.s32.totalorder %s120, %s121
      %p135 = scmp.eq.s32.totalorder %s24, 1
      %p136 = por %p134, %p135
      %p138 = scmp.ne.s32.totalorder %s121, %s137
      %p139 = scmp.eq.s32.totalorder %s24, 0
      %p140 = por %p138, %p139
      %p141 = scmp.le.s32.totalorder 1, %s18
      %p142 = scmp.lt.s32.totalorder %s18, 3
      %p143 = pnand %p141, %p142
      %p144 = pneg %p143
      // Predicated region
      $region9: #{tpu_custom_call.1} parent=5 // pred_check
        _
      $region10: #{tpu_custom_call.1} parent=5 // pred_check_branch
        %146 = sbr.rel (%p143) target = $region12
      $region11: #{tpu_custom_call.1} parent=5 // pred_region
        %s147 = ssub.s32 %s18, 1
        // Predicated region
        $region13: #{tpu_custom_call.1} parent=11 // pred_check
          %p148 = pneg %p65
        $region14: #{tpu_custom_call.1} parent=11 // pred_check_branch
          %150 = sbr.rel (%p148) target = $region16
        $region15: #{tpu_custom_call.1} parent=11 // pred_region
          _
        $region16: #{tpu_custom_call.1} parent=11 // pred_fallthru
          _
        // Predicated region
        $region17: #{tpu_custom_call.1} parent=11 // pred_check
          %p151 = pneg %p86
        $region18: #{tpu_custom_call.1} parent=11 // pred_check_branch
          %153 = sbr.rel (%p151) target = $region20
        $region19: #{tpu_custom_call.1} parent=11 // pred_region
          _
        $region20: #{tpu_custom_call.1} parent=11 // pred_fallthru
          _
        // Predicated region
        $region21: #{tpu_custom_call.1} parent=11 // pred_check
          %p154 = pneg %p107
        $region22: #{tpu_custom_call.1} parent=11 // pred_check_branch
          %156 = sbr.rel (%p154) target = $region24
        $region23: #{tpu_custom_call.1} parent=11 // pred_region
          _
        $region24: #{tpu_custom_call.1} parent=11 // pred_fallthru
          _
      $region12: #{tpu_custom_call.1} parent=5 // pred_fallthru
        _
      %p157 = scmp.lt.s32.totalorder %s18, 2
      // Predicated region
      $region25: #{tpu_custom_call.1} parent=5 // pred_check
        %p158 = pneg %p157
      $region26: #{tpu_custom_call.1} parent=5 // pred_check_branch
        %160 = sbr.rel (%p158) target = $region28
      $region27: #{tpu_custom_call.1} parent=5 // pred_region
        // Predicated region
        $region29: #{tpu_custom_call.1} parent=27 // pred_check
          %p161 = pneg %p38
        $region30: #{tpu_custom_call.1} parent=27 // pred_check_branch
          %163 = sbr.rel (%p161) target = $region32
        $region31: #{tpu_custom_call.1} parent=27 // pred_region
          %s164 = sand.u32 %s28, 1
          %s165 = scalar_lea.sflag [#allocation4], %s164
          %s166 = sand.u32 %s28, 1
          %s167 = smul.addr %s166, 64
          %s168 = scalar_lea.vmem [#allocation3], %s167
          %s170 = ssub.s32 1024, 1024
          %171 = vsyncadd %s165, %s170
          %s172 = smul.addr %s18, 128
          %s173 = scalar_lea.hbm %s0, %s172
          %s174 = sshll.u32 %s168, 4
          %s175 = int_to_ptr.vmem [resolvable:$true] %s174
          %180 = dma.hbm_to_vmem [thread:$0]  %s173, 1024, %s175, %s165, 256, 128, 8
        $region32: #{tpu_custom_call.1} parent=27 // pred_fallthru
          _
      $region28: #{tpu_custom_call.1} parent=5 // pred_fallthru
        _
      %p181 = scmp.le.s32.totalorder 1, %s18
      %p182 = scmp.lt.s32.totalorder %s18, 3
      %p183 = pnand %p181, %p182
      %p184 = pneg %p183
      // Predicated region
      $region33: #{tpu_custom_call.1} parent=5 // pred_check
        _
      $region34: #{tpu_custom_call.1} parent=5 // pred_check_branch
        %186 = sbr.rel (%p183) target = $region36
      $region35: #{tpu_custom_call.1} parent=5 // pred_region
        %s187 = ssub.s32 %s18, 1
        %s188 = sand.u32 %s31, 1
        %s189 = scalar_lea.sflag [#allocation4], %s188
        %s190 = sand.u32 %s31, 1
        %s191 = smul.addr %s190, 64
        %s192 = scalar_lea.vmem [#allocation3], %s191
        // Predicated region
        $region37: #{tpu_custom_call.1} parent=35 // pred_check
          %p193 = pneg %p44
        $region38: #{tpu_custom_call.1} parent=35 // pred_check_branch
          %195 = sbr.rel (%p193) target = $region40
        $region39: #{tpu_custom_call.1} parent=35 // pred_region
          %196 = dma.done %s189, 1024
        $region40: #{tpu_custom_call.1} parent=35 // pred_fallthru
          _
        %s197 = sand.u32 %s31, 1
        %s198 = scalar_lea.sflag [#allocation4], %s197
        %s199 = sand.u32 %s31, 1
        %s200 = smul.addr %s199, 64
        %s201 = scalar_lea.vmem [#allocation3], %s200
        %p202 = pneg %p44
        %p203 = pneg %p41
        %p204 = pneg %p65
        %p205 = pneg %p62
        %p206 = pneg %p86
        %p207 = pneg %p83
        %p208 = pneg %p107
        %p209 = pneg %p104
        %p210 = pneg %p133
        %p211 = pneg %p130
        %s212 = sand.u32 %s120, 1
        %s213 = scalar_lea.sflag [#allocation5], %s212
        %s214 = sand.u32 %s120, 1
        %s215 = scalar_lea.vmem [#allocation6], %s214
        %v216 = vld [vmem:[%s192] sm:$0xff]
        %v217 = vld [vmem:[%s192 + $0x8] sm:$0xff]
        %v218 = vld [vmem:[%s192 + $0x10] sm:$0xff]
        %v219 = vld [vmem:[%s192 + $0x18] sm:$0xff]
        %v220 = vld [vmem:[%s192 + $0x20] sm:$0xff]
        %v221 = vld [vmem:[%s192 + $0x28] sm:$0xff]
        %v222 = vld [vmem:[%s192 + $0x30] sm:$0xff]
        %v223 = vld [vmem:[%s192 + $0x38] sm:$0xff]
        %v224 = vld [vmem:[%s1] sm:$0xff]
        %v225 = vld [vmem:[%s1 + $0x8] sm:$0xff]
        %v226 = vld [vmem:[%s1 + $0x10] sm:$0xff]
        %v227 = vld [vmem:[%s1 + $0x18] sm:$0xff]
        %v228 = vld [vmem:[%s1 + $0x20] sm:$0xff]
        %v229 = vld [vmem:[%s1 + $0x28] sm:$0xff]
        %v230 = vld [vmem:[%s1 + $0x30] sm:$0xff]
        %v231 = vld [vmem:[%s1 + $0x38] sm:$0xff]
        %v232 = vld [vmem:[%s3] sm:$0xff]
        %v233 = vld [vmem:[%s3 + $0x8] sm:$0xff]
        %235 = vset.pattern.permute.xlu0 0
        %236 = vperm.xlu0 %235, %v224
        %v237 = vpop.permute.xlu0 %236
        %240 = vset.pattern.permute.xlu0 0
        %241 = vperm.xlu0 %240, %v225
        %v242 = vpop.permute.xlu0 %241
        %245 = vset.pattern.permute.xlu0 0
        %246 = vperm.xlu0 %245, %v226
        %v247 = vpop.permute.xlu0 %246
        %250 = vset.pattern.permute.xlu0 0
        %251 = vperm.xlu0 %250, %v227
        %v252 = vpop.permute.xlu0 %251
        %255 = vset.pattern.permute.xlu0 0
        %256 = vperm.xlu0 %255, %v228
        %v257 = vpop.permute.xlu0 %256
        %260 = vset.pattern.permute.xlu0 0
        %261 = vperm.xlu0 %260, %v229
        %v262 = vpop.permute.xlu0 %261
        %265 = vset.pattern.permute.xlu0 0
        %266 = vperm.xlu0 %265, %v230
        %v267 = vpop.permute.xlu0 %266
        %270 = vset.pattern.permute.xlu0 0
        %271 = vperm.xlu0 %270, %v231
        %v272 = vpop.permute.xlu0 %271
        %v274 = vmul.f32 %v216, %v237
        %v275 = vmul.f32 %v217, %v242
        %v276 = vmul.f32 %v218, %v247
        %v277 = vmul.f32 %v219, %v252
        %v278 = vmul.f32 %v220, %v257
        %v279 = vmul.f32 %v221, %v262
        %v280 = vmul.f32 %v222, %v267
        %v281 = vmul.f32 %v223, %v272
        %v282 = vadd.f32 %v274, %v275
        %v283 = vadd.f32 %v282, %v276
        %v284 = vadd.f32 %v283, %v277
        %v285 = vadd.f32 %v284, %v278
        %v286 = vadd.f32 %v285, %v279
        %v287 = vadd.f32 %v286, %v280
        %v288 = vadd.f32 %v287, %v281
        %v289 = vrot.slane %v288, 4
        %v290 = vadd.f32 %v288, %v289
        %v291 = vrot.slane %v290, 2
        %v292 = vadd.f32 %v290, %v291
        %v293 = vrot.slane %v292, 1
        %v294 = vadd.f32 %v292, %v293
        %v295 = vadd.f32 %v216, %v218
        %v296 = vadd.f32 %v295, %v220
        %v297 = vadd.f32 %v296, %v222
        %v298 = vadd.f32 %v217, %v219
        %v299 = vadd.f32 %v298, %v221
        %v300 = vadd.f32 %v299, %v223
        %v301 = vmul.f32 %v216, %v216
        %v302 = vmul.f32 %v217, %v217
        %v303 = vmul.f32 %v218, %v218
        %v304 = vmul.f32 %v219, %v219
        %v305 = vmul.f32 %v220, %v220
        %v306 = vmul.f32 %v221, %v221
        %v307 = vmul.f32 %v222, %v222
        %v308 = vmul.f32 %v223, %v223
        %v309 = vadd.f32 %v301, %v303
        %v310 = vadd.f32 %v309, %v305
        %v311 = vadd.f32 %v310, %v307
        %v312 = vadd.f32 %v302, %v304
        %v313 = vadd.f32 %v312, %v306
        %v314 = vadd.f32 %v313, %v308
        %v315 = vmul.f32 %v297, %v297
        %v316 = vmul.f32 %v300, %v300
        %v317 = vsub.f32 %v315, %v311
        %v318 = vsub.f32 %v316, %v314
        %v319 = vmul.f32 %v317, 0.5
        %v320 = vmul.f32 %v318, 0.5
        %322 = vset.pattern.permute.xlu0 0
        %323 = vperm.xlu0 %322, %v232
        %v324 = vpop.permute.xlu0 %323
        %327 = vset.pattern.permute.xlu0 0
        %328 = vperm.xlu0 %327, %v233
        %v329 = vpop.permute.xlu0 %328
        %v331 = vmul.f32 %v319, %v324
        %v332 = vmul.f32 %v320, %v329
        %v333 = vadd.f32 %v331, %v332
        %v334 = vrot.slane %v333, 4
        %v335 = vadd.f32 %v333, %v334
        %v336 = vrot.slane %v335, 2
        %v337 = vadd.f32 %v335, %v336
        %v338 = vrot.slane %v337, 1
        %v339 = vadd.f32 %v337, %v338
        %v340 = vadd.f32 %v294, %v339
        %v341 = vld [vmem:[#allocation2] sm:$0x1]
        %343 = vset.pattern.permute.xlu0 0
        %344 = vperm.xlu0 %343, %v341
        %v345 = vpop.permute.xlu0 %344
        %v347 = vlaneseq
        %v348 = vshrl.u32 %v347, 7
        %v349 = vsub.s32 0, %v348
        %v350 = vrot.slane %v345, %v349
        %v351 = vadd.f32 %v340, %v350
        %v352 = vsub.f32 0.0, %v351
        %v353 = vmul.f32 %v352, 1.442695
        %v354 = vpow.pop %v353
        %v355 = vadd.f32 %v354, 1.0
        %v356 = vrcp.pop %v355
        %357 = vst [vmem:[%s215] sm:$0x1] %v356
        %s358 = sand.u32 %s120, 1
        %s359 = scalar_lea.sflag [#allocation5], %s358
        %s360 = sand.u32 %s120, 1
        %s361 = scalar_lea.vmem [#allocation6], %s360
        // Predicated region
        $region41: #{tpu_custom_call.1} parent=35 // pred_check
          %p362 = pneg %p130
        $region42: #{tpu_custom_call.1} parent=35 // pred_check_branch
          %364 = sbr.rel (%p362) target = $region44
        $region43: #{tpu_custom_call.1} parent=35 // pred_region
          %s366 = ssub.s32 16, 16
          %367 = vsyncadd %s359, %s366
          %s368 = smul.addr %s23, 16
          %s369 = scalar_lea.hbm %s4, %s368
          %s371 = sshll.u32 %s361, 4
          %s372 = int_to_ptr.vmem [resolvable:$true] %s371
          %374 = dma.vmem_to_hbm [thread:$0]  %s372, 16, %s369, %s359
        $region44: #{tpu_custom_call.1} parent=35 // pred_fallthru
          _
      $region36: #{tpu_custom_call.1} parent=5 // pred_fallthru
        _
      %p375 = scmp.le.s32.totalorder 2, %s18
      // Predicated region
      $region45: #{tpu_custom_call.1} parent=5 // pred_check
        %p376 = pneg %p375
      $region46: #{tpu_custom_call.1} parent=5 // pred_check_branch
        %378 = sbr.rel (%p376) target = $region48
      $region47: #{tpu_custom_call.1} parent=5 // pred_region
        %s379 = ssub.s32 %s18, 2
        // Predicated region
        $region49: #{tpu_custom_call.1} parent=47 // pred_check
          %p380 = pneg %p136
        $region50: #{tpu_custom_call.1} parent=47 // pred_check_branch
          %382 = sbr.rel (%p380) target = $region52
        $region51: #{tpu_custom_call.1} parent=47 // pred_region
          %s383 = sand.u32 %s121, 1
          %s384 = scalar_lea.sflag [#allocation5], %s383
          %s385 = sand.u32 %s121, 1
          %s386 = scalar_lea.vmem [#allocation6], %s385
          %387 = dma.done %s384, 16
        $region52: #{tpu_custom_call.1} parent=47 // pred_fallthru
          _
      $region48: #{tpu_custom_call.1} parent=5 // pred_fallthru
        _
    $region6: #{tpu_custom_call.1} parent=1 // loop_footer
      %s22 = sadd.s32 1, %s18
    $region7: #{tpu_custom_call.1} parent=1 // loop_footer_branch
      %17 = sbr.rel target = $region3
    $region8: #{tpu_custom_call.1} parent=1 // loop_exit
      _
    %388 = vsyncpa [#allocation4], 1
    %s389 = scalar_lea.sflag [#allocation4], 1
    %390 = vsyncpa %s389, 1
    %391 = vsyncpa [#allocation5], 1
    %s392 = scalar_lea.sflag [#allocation5], 1
    %393 = vsyncpa %s392, 1

</llo_original>
